<compile_context>
chip_gen: v5e
topology: v5e:2x2
jax: 0.10.0
libtpu: 0.0.40
codegen_flags: <defaults>
</compile_context>

<pallas_src>
import functools

import jax
import jax.numpy as jnp
from jax.experimental import pallas as pl
from jax.experimental.pallas import tpu as pltpu


_LANE = 128
_MAX_TT = 2048      # lane tile (f32: 3 inputs x 2 bufs x 1 MiB = 6 MiB @ tb=128)
_MAX_TB = 128       # sublane (row) tile


def _round_up(x, m):
    return ((x + m - 1) // m) * m


def _cdiv(a, b):
    return (a + b - 1) // b


# ----------------------------------------------------------------------------
# Kernel: one GRPO branch, per-row masked (num, den) partial sums
# ----------------------------------------------------------------------------
def _grpo_branch_kernel(clip_eps, true_t, tt, nk_per,
                        lp_ref, lpo_ref, mask_ref, adv_ref, num_ref, den_ref):
    """Accumulates per-row sum(loss*mask) and sum(mask) over sequence tiles.

    Grid: (n_par, nb, nk_per) = (seq-split halves, batch tiles, seq tiles).
    num_ref / den_ref are the resident (tb, 1) f32 output blocks for the
    current (p, b); they are zeroed at k == 0 and accumulated across k.
    """
    p = pl.program_id(0)
    k = pl.program_id(2)

    @pl.when(k == 0)
    def _():
        num_ref[...] = jnp.zeros_like(num_ref)
        den_ref[...] = jnp.zeros_like(den_ref)

    # Global (unclamped) sequence-tile index -> column validity mask.  Tiles
    # whose index_map had to be clamped (p*nk_per + k >= nk_total) and padded
    # columns of partial edge tiles are fully masked out here.
    k_glob = p * nk_per + k
    col = k_glob * tt + jax.lax.broadcasted_iota(jnp.int32, lp_ref.shape, 1)
    valid = col < true_t                                    # (tb, tt) bool

    # Load in native dtype, widen to f32 in-register.
    lp = lp_ref[...].astype(jnp.float32)
    lpo = lpo_ref[...].astype(jnp.float32)
    maskf = jnp.where(valid, mask_ref[...].astype(jnp.float32), 0.0)
    adv = adv_ref[...].astype(jnp.float32)                  # (tb, 1)

    # Mask BEFORE exp so garbage in padded/out-of-range columns stays finite.
    delta = jnp.where(valid, lp - lpo, 0.0)
    ratio = jnp.exp(delta)
    surr1 = ratio * adv
    surr2 = jnp.clip(ratio, 1.0 - clip_eps, 1.0 + clip_eps) * adv
    loss = -jnp.minimum(surr1, surr2)                       # (tb, tt)

    num_ref[...] += jnp.sum(loss * maskf, axis=-1, keepdims=True)
    den_ref[...] += jnp.sum(maskf, axis=-1, keepdims=True)


def grpo_branch_loss(logprobs, logprobs_old, attention_mask, advantages, *,
                     clip_eps=0.2, average_per_token=True,
                     masked_sum_divisor=32.0):
    """Scalar GRPO loss for one branch.  Inputs keep their native dtypes
    (f32 / bf16 logprobs, f32 / int8 / bool mask); no wrapper-side copies."""
    B, T = logprobs.shape
    assert logprobs_old.shape == (B, T)
    assert attention_mask.shape == (B, T)
    assert advantages.shape == (B, 1)

    # ---- tile selection (per branch) ----
    tt = T if T <= _LANE else min(_MAX_TT, _round_up(T, _LANE))
    nk_total = _cdiv(T, tt)
    if B <= _MAX_TB:
        tb, nb = B, 1                      # full-dim escape hatch on sublanes
    else:
        tb, nb = _MAX_TB, _cdiv(B, _MAX_TB)

    # Guarantee >=2 blocks on a "parallel" axis so both v7x TensorCores engage
    # for small rollout batches; harmless on single-TC v5e/v6e.
    n_par = 2 if (nb == 1 and nk_total >= 2) else 1
    nk_per = _cdiv(nk_total, n_par)

    def t_idx(p, b, k):
        # Clamp so the DMA never targets a block beyond the array; clamped
        # (duplicate) tiles contribute zero via the in-kernel validity mask.
        return (b, jnp.minimum(p * nk_per + k, nk_total - 1))

    kernel = functools.partial(_grpo_branch_kernel, float(clip_eps), T, tt,
                               nk_per)

    num_out, den_out = pl.pallas_call(
        kernel,
        out_shape=(jax.ShapeDtypeStruct((n_par, B, 1), jnp.float32),
                   jax.ShapeDtypeStruct((n_par, B, 1), jnp.float32)),
        grid_spec=pltpu.PrefetchScalarGridSpec(
            num_scalar_prefetch=0,
            grid=(n_par, nb, nk_per),
            in_specs=[
                pl.BlockSpec((tb, tt), t_idx),                 # logprobs
                pl.BlockSpec((tb, tt), t_idx),                 # logprobs_old
                pl.BlockSpec((tb, tt), t_idx),                 # attention_mask
                pl.BlockSpec((tb, 1), lambda p, b, k: (b, 0)),  # advantages
            ],
            out_specs=[
                pl.BlockSpec((None, tb, 1), lambda p, b, k: (p, b, 0)),
                pl.BlockSpec((None, tb, 1), lambda p, b, k: (p, b, 0)),
            ],
        ),
        compiler_params=pltpu.CompilerParams(
            dimension_semantics=("parallel", "parallel", "arbitrary")),
    )(logprobs, logprobs_old, attention_mask, advantages)

    # Tiny O(B) combine of per-half partials, divide, batch mean (plain JAX).
    num = num_out.sum(axis=0)[:, 0]        # (B,)
    den = den_out.sum(axis=0)[:, 0]        # (B,)
    if average_per_token:
        per_row = num / den                # masked_mean (NaN iff mask all-zero,
    else:                                  # same as the PyTorch reference)
        per_row = num / masked_sum_divisor  # masked_sum semantics
    return per_row.mean()


# ----------------------------------------------------------------------------
# GRPOLoss module equivalent (forward pass)
# ----------------------------------------------------------------------------
class GRPOLossPallas:
    def __init__(self, clip_eps=0.2, use_latent_loss=True, use_answer_loss=True,
                 average_per_token_loss=True, masked_sum_divisor=32.0):
        self.clip_eps = clip_eps
        self.use_latent_loss = use_latent_loss
        self.use_answer_loss = use_answer_loss
        self.average_per_token_loss = average_per_token_loss
        # The PyTorch spec hard-codes /32 inside masked_sum; plumbed here so
        # other configurations are not silently wrong.
        self.masked_sum_divisor = masked_sum_divisor

    def _branch(self, lp_new, lp_old, mask, adv):
        return grpo_branch_loss(
            lp_new, lp_old, mask, adv,
            clip_eps=self.clip_eps,
            average_per_token=self.average_per_token_loss,
            masked_sum_divisor=self.masked_sum_divisor)

    def __call__(self, latent_logprobs, answer_logprobs, experience):
        adv = experience["advantages"]
        if self.use_latent_loss:
            latent_loss = self._branch(latent_logprobs,
                                       experience["latent_logprobs"],
                                       experience["latent_attention_mask"], adv)
        else:
            latent_loss = jnp.float32(0.0)
        if self.use_answer_loss:
            answer_loss = self._branch(answer_logprobs,
                                       experience["answer_logprobs"],
                                       experience["answer_attention_mask"], adv)
        else:
            answer_loss = jnp.float32(0.0)
        return {"total_loss": latent_loss + answer_loss,
                "latent_loss": latent_loss,
                "answer_loss": answer_loss}


# ----------------------------------------------------------------------------
# Pure-JAX reference (for correctness checks)
# ----------------------------------------------------------------------------
def _ref_branch(lp, lp_old, mask, adv, clip_eps, average_per_token=True,
                divisor=32.0):
    lp = lp.astype(jnp.float32)
    lp_old = lp_old.astype(jnp.float32)
    mask = mask.astype(jnp.float32)
    adv = adv.astype(jnp.float32)
    ratio = jnp.exp(lp - lp_old)
    surr1 = ratio * adv
    surr2 = jnp.clip(ratio, 1.0 - clip_eps, 1.0 + clip_eps) * adv
    loss = -jnp.minimum(surr1, surr2)
    if average_per_token:
        per_row = (loss * mask).sum(-1) / mask.sum(-1)
    else:
        per_row = (loss * mask).sum(-1) / divisor
    return per_row.mean()


if __name__ == "__main__":
    key = jax.random.PRNGKey(0)

    # ------------------------------------------------------------------ #
    # Test 1: small f32 case matching the module's typical call shapes   #
    # ------------------------------------------------------------------ #
    B, T_LAT, T_ANS = 2, 8, 16
    ks = jax.random.split(key, 8)
    lat_new = jax.random.normal(ks[0], (B, T_LAT), jnp.float32) * 0.1 - 1.0
    lat_old = jax.random.normal(ks[1], (B, T_LAT), jnp.float32) * 0.1 - 1.0
    ans_new = jax.random.normal(ks[2], (B, T_ANS), jnp.float32) * 0.1 - 1.0
    ans_old = jax.random.normal(ks[3], (B, T_ANS), jnp.float32) * 0.1 - 1.0
    lat_mask = (jax.random.uniform(ks[4], (B, T_LAT)) > 0.2).astype(jnp.float32)
    ans_mask = (jax.random.uniform(ks[5], (B, T_ANS)) > 0.2).astype(jnp.float32)
    lat_mask = lat_mask.at[:, 0].set(1.0)   # guarantee non-empty masks
    ans_mask = ans_mask.at[:, 0].set(1.0)
    adv = jax.random.normal(ks[6], (B, 1), jnp.float32)

    experience = {
        "latent_logprobs": lat_old,
        "answer_logprobs": ans_old,
        "latent_attention_mask": lat_mask,
        "answer_attention_mask": ans_mask,
        "advantages": adv,
    }

    for avg in (True, False):
        mod = GRPOLossPallas(clip_eps=0.2, use_latent_loss=True,
                             use_answer_loss=True, average_per_token_loss=avg)
        out = mod(lat_new, ans_new, experience)
        out = jax.tree_util.tree_map(jax.block_until_ready, out)
        ref_lat = _ref_branch(lat_new, lat_old, lat_mask, adv, 0.2, avg)
        ref_ans = _ref_branch(ans_new, ans_old, ans_mask, adv, 0.2, avg)
        assert jnp.allclose(out["latent_loss"], ref_lat, atol=1e-5)
        assert jnp.allclose(out["answer_loss"], ref_ans, atol=1e-5)
        assert jnp.allclose(out["total_loss"], ref_lat + ref_ans, atol=1e-5)

    # ------------------------------------------------------------------ #
    # Test 2: bf16 logprobs + int8 mask, ragged T (partial edge tile),   #
    # exercises the 2-way parallel sequence split (nb == 1, nk_total = 3) #
    # ------------------------------------------------------------------ #
    B2, T2 = 4, 4500
    ks2 = jax.random.split(jax.random.PRNGKey(1), 4)
    lp2_new = (jax.random.normal(ks2[0], (B2, T2), jnp.float32) * 0.1
               - 1.0).astype(jnp.bfloat16)
    lp2_old = (jax.random.normal(ks2[1], (B2, T2), jnp.float32) * 0.1
               - 1.0).astype(jnp.bfloat16)
    mask2 = (jax.random.uniform(ks2[2], (B2, T2)) > 0.2).astype(jnp.int8)
    mask2 = mask2.at[:, 0].set(1)
    adv2 = jax.random.normal(ks2[3], (B2, 1), jnp.float32)

    got2 = jax.block_until_ready(
        grpo_branch_loss(lp2_new, lp2_old, mask2, adv2,
                         clip_eps=0.2, average_per_token=True))
    ref2 = _ref_branch(lp2_new, lp2_old, mask2, adv2, 0.2, True)
    assert jnp.allclose(got2, ref2, atol=1e-4)

    print("KERNEL_OK")
</pallas_src>

<mosaic_0001>
module attributes {stable_mosaic.version = 11 : i64} {
  func.func @_grpo_branch_kernel(%arg0: i32, %arg1: i32, %arg2: i32, %arg3: memref<2x8xf32, #tpu.memory_space<vmem>>, %arg4: memref<2x8xf32, #tpu.memory_space<vmem>>, %arg5: memref<2x8xf32, #tpu.memory_space<vmem>>, %arg6: memref<2x1xf32, #tpu.memory_space<vmem>>, %arg7: memref<1x2x1xf32, #tpu.memory_space<vmem>>, %arg8: memref<1x2x1xf32, #tpu.memory_space<vmem>>) attributes {dimension_semantics = [#tpu.dimension_semantics<parallel>, #tpu.dimension_semantics<parallel>, #tpu.dimension_semantics<arbitrary>], iteration_bounds = array<i64: 1, 1, 1>, scalar_prefetch = 0 : i64, scratch_operands = 0 : i64, tpu.core_type = #tpu.core_type<tc>, window_params = [{transform_indices = @transform_0, window_bounds = array<i64: 2, 8>}, {transform_indices = @transform_1, window_bounds = array<i64: 2, 8>}, {transform_indices = @transform_2, window_bounds = array<i64: 2, 8>}, {transform_indices = @transform_3, window_bounds = array<i64: 2, 1>}, {transform_indices = @transform_4, window_bounds = array<i64: 1, 2, 1>}, {transform_indices = @transform_5, window_bounds = array<i64: 1, 2, 1>}]} {
    %c0_i32 = arith.constant 0 : i32
    %0 = arith.cmpi eq, %arg2, %c0_i32 : i32
    %1 = arith.extui %0 : i1 to i32
    %c0_i32_0 = arith.constant 0 : i32
    %2 = arith.cmpi ne, %1, %c0_i32_0 : i32
    scf.if %2 {
      %cst_27 = arith.constant 0.000000e+00 : f32
      %49 = vector.broadcast %cst_27 : f32 to vector<2x1xf32>
      %c0_28 = arith.constant 0 : index
      %c0_29 = arith.constant 0 : index
      %c0_30 = arith.constant 0 : index
      %50 = vector.load %arg7[%c0_28, %c0_29, %c0_30] : memref<1x2x1xf32, #tpu.memory_space<vmem>>, vector<1x2x1xf32>
      %51 = vector.shape_cast %50 : vector<1x2x1xf32> to vector<2x1xf32>
      %52 = vector.shape_cast %49 : vector<2x1xf32> to vector<1x2x1xf32>
      tpu.vector_store %arg7[%c0_28, %c0_29, %c0_30], %52 {strides = array<i32>} : memref<1x2x1xf32, #tpu.memory_space<vmem>>, vector<1x2x1xf32>,
      %cst_31 = arith.constant 0.000000e+00 : f32
      %53 = vector.broadcast %cst_31 : f32 to vector<2x1xf32>
      %c0_32 = arith.constant 0 : index
      %c0_33 = arith.constant 0 : index
      %c0_34 = arith.constant 0 : index
      %54 = vector.load %arg8[%c0_32, %c0_33, %c0_34] : memref<1x2x1xf32, #tpu.memory_space<vmem>>, vector<1x2x1xf32>
      %55 = vector.shape_cast %54 : vector<1x2x1xf32> to vector<2x1xf32>
      %56 = vector.shape_cast %53 : vector<2x1xf32> to vector<1x2x1xf32>
      tpu.vector_store %arg8[%c0_32, %c0_33, %c0_34], %56 {strides = array<i32>} : memref<1x2x1xf32, #tpu.memory_space<vmem>>, vector<1x2x1xf32>,
    } else {
    }
    %c1_i32 = arith.constant 1 : i32
    %3 = arith.muli %arg0, %c1_i32 : i32
    %4 = arith.addi %3, %arg2 : i32
    %c8_i32 = arith.constant 8 : i32
    %5 = arith.muli %4, %c8_i32 : i32
    %6 = tpu.iota {dimensions = array<i32: 1>} : vector<2x8xi32>
    %7 = vector.broadcast %5 : i32 to vector<2x8xi32>
    %8 = arith.addi %7, %6 : vector<2x8xi32>
    %c8_i32_1 = arith.constant 8 : i32
    %9 = vector.broadcast %c8_i32_1 : i32 to vector<2x8xi32>
    %10 = arith.cmpi slt, %8, %9 : vector<2x8xi32>
    %c0 = arith.constant 0 : index
    %c0_2 = arith.constant 0 : index
    %11 = vector.load %arg3[%c0, %c0_2] : memref<2x8xf32, #tpu.memory_space<vmem>>, vector<2x8xf32>
    %c0_3 = arith.constant 0 : index
    %c0_4 = arith.constant 0 : index
    %12 = vector.load %arg4[%c0_3, %c0_4] : memref<2x8xf32, #tpu.memory_space<vmem>>, vector<2x8xf32>
    %c0_5 = arith.constant 0 : index
    %c0_6 = arith.constant 0 : index
    %13 = vector.load %arg5[%c0_5, %c0_6] : memref<2x8xf32, #tpu.memory_space<vmem>>, vector<2x8xf32>
    %cst = arith.constant 0.000000e+00 : f32
    %14 = vector.broadcast %cst : f32 to vector<2x8xf32>
    %15 = arith.select %10, %13, %14 : vector<2x8xi1>, vector<2x8xf32>
    %c0_7 = arith.constant 0 : index
    %c0_8 = arith.constant 0 : index
    %16 = vector.load %arg6[%c0_7, %c0_8] : memref<2x1xf32, #tpu.memory_space<vmem>>, vector<2x1xf32>
    %17 = arith.subf %11, %12 : vector<2x8xf32>
    %cst_9 = arith.constant 0.000000e+00 : f32
    %18 = vector.broadcast %cst_9 : f32 to vector<2x8xf32>
    %19 = arith.select %10, %17, %18 : vector<2x8xi1>, vector<2x8xf32>
    %20 = math.exp %19 : vector<2x8xf32>
    %21 = vector.broadcast %16 : vector<2x1xf32> to vector<2x8xf32>
    %22 = arith.mulf %20, %21 : vector<2x8xf32>
    %cst_10 = arith.constant 8.000000e-01 : f32
    %cst_11 = arith.constant 1.200000e+00 : f32
    %23 = vector.broadcast %cst_10 : f32 to vector<2x8xf32>
    %24 = arith.maximumf %23, %20 : vector<2x8xf32>
    %25 = vector.broadcast %cst_11 : f32 to vector<2x8xf32>
    %26 = arith.minimumf %25, %24 : vector<2x8xf32>
    %27 = vector.broadcast %16 : vector<2x1xf32> to vector<2x8xf32>
    %28 = arith.mulf %26, %27 : vector<2x8xf32>
    %29 = arith.minimumf %22, %28 : vector<2x8xf32>
    %cst_12 = arith.constant 0.000000e+00 : f32
    %30 = vector.broadcast %cst_12 : f32 to vector<2x8xf32>
    %31 = arith.subf %30, %29 : vector<2x8xf32>
    %c0_13 = arith.constant 0 : index
    %c0_14 = arith.constant 0 : index
    %c0_15 = arith.constant 0 : index
    %32 = vector.load %arg7[%c0_13, %c0_14, %c0_15] : memref<1x2x1xf32, #tpu.memory_space<vmem>>, vector<1x2x1xf32>
    %33 = vector.shape_cast %32 : vector<1x2x1xf32> to vector<2x1xf32>
    %34 = arith.mulf %31, %15 : vector<2x8xf32>
    %cst_16 = arith.constant dense<0.000000e+00> : vector<2xf32>
    %35 = vector.multi_reduction <add>, %34, %cst_16 [1] : vector<2x8xf32> to vector<2xf32>
    %36 = vector.shape_cast %35 : vector<2xf32> to vector<2x1xf32>
    %37 = arith.addf %33, %36 : vector<2x1xf32>
    %c0_17 = arith.constant 0 : index
    %c0_18 = arith.constant 0 : index
    %c0_19 = arith.constant 0 : index
    %38 = vector.load %arg7[%c0_17, %c0_18, %c0_19] : memref<1x2x1xf32, #tpu.memory_space<vmem>>, vector<1x2x1xf32>
    %39 = vector.shape_cast %38 : vector<1x2x1xf32> to vector<2x1xf32>
    %40 = vector.shape_cast %37 : vector<2x1xf32> to vector<1x2x1xf32>
    tpu.vector_store %arg7[%c0_17, %c0_18, %c0_19], %40 {strides = array<i32>} : memref<1x2x1xf32, #tpu.memory_space<vmem>>, vector<1x2x1xf32>,
    %c0_20 = arith.constant 0 : index
    %c0_21 = arith.constant 0 : index
    %c0_22 = arith.constant 0 : index
    %41 = vector.load %arg8[%c0_20, %c0_21, %c0_22] : memref<1x2x1xf32, #tpu.memory_space<vmem>>, vector<1x2x1xf32>
    %42 = vector.shape_cast %41 : vector<1x2x1xf32> to vector<2x1xf32>
    %cst_23 = arith.constant dense<0.000000e+00> : vector<2xf32>
    %43 = vector.multi_reduction <add>, %15, %cst_23 [1] : vector<2x8xf32> to vector<2xf32>
    %44 = vector.shape_cast %43 : vector<2xf32> to vector<2x1xf32>
    %45 = arith.addf %42, %44 : vector<2x1xf32>
    %c0_24 = arith.constant 0 : index
    %c0_25 = arith.constant 0 : index
    %c0_26 = arith.constant 0 : index
    %46 = vector.load %arg8[%c0_24, %c0_25, %c0_26] : memref<1x2x1xf32, #tpu.memory_space<vmem>>, vector<1x2x1xf32>
    %47 = vector.shape_cast %46 : vector<1x2x1xf32> to vector<2x1xf32>
    %48 = vector.shape_cast %45 : vector<2x1xf32> to vector<1x2x1xf32>
    tpu.vector_store %arg8[%c0_24, %c0_25, %c0_26], %48 {strides = array<i32>} : memref<1x2x1xf32, #tpu.memory_space<vmem>>, vector<1x2x1xf32>,
    return
  }
  func.func @transform_0(%arg0: i32, %arg1: i32, %arg2: i32) -> (i32, i32) {
    %c1_i32 = arith.constant 1 : i32
    %0 = arith.muli %arg0, %c1_i32 : i32
    %1 = arith.addi %0, %arg2 : i32
    %c0_i32 = arith.constant 0 : i32
    %2 = arith.minsi %1, %c0_i32 : i32
    %c0_i32_0 = arith.constant 0 : i32
    return %arg1, %2 : i32, i32
  }
  func.func @transform_1(%arg0: i32, %arg1: i32, %arg2: i32) -> (i32, i32) {
    %c1_i32 = arith.constant 1 : i32
    %0 = arith.muli %arg0, %c1_i32 : i32
    %1 = arith.addi %0, %arg2 : i32
    %c0_i32 = arith.constant 0 : i32
    %2 = arith.minsi %1, %c0_i32 : i32
    %c0_i32_0 = arith.constant 0 : i32
    return %arg1, %2 : i32, i32
  }
  func.func @transform_2(%arg0: i32, %arg1: i32, %arg2: i32) -> (i32, i32) {
    %c1_i32 = arith.constant 1 : i32
    %0 = arith.muli %arg0, %c1_i32 : i32
    %1 = arith.addi %0, %arg2 : i32
    %c0_i32 = arith.constant 0 : i32
    %2 = arith.minsi %1, %c0_i32 : i32
    %c0_i32_0 = arith.constant 0 : i32
    return %arg1, %2 : i32, i32
  }
  func.func @transform_3(%arg0: i32, %arg1: i32, %arg2: i32) -> (i32, i32) {
    %c0_i32 = arith.constant 0 : i32
    %c0_i32_0 = arith.constant 0 : i32
    return %arg1, %c0_i32 : i32, i32
  }
  func.func @transform_4(%arg0: i32, %arg1: i32, %arg2: i32) -> (i32, i32, i32) {
    %c0_i32 = arith.constant 0 : i32
    %c0_i32_0 = arith.constant 0 : i32
    return %arg0, %arg1, %c0_i32 : i32, i32, i32
  }
  func.func @transform_5(%arg0: i32, %arg1: i32, %arg2: i32) -> (i32, i32, i32) {
    %c0_i32 = arith.constant 0 : i32
    %c0_i32_0 = arith.constant 0 : i32
    return %arg0, %arg1, %c0_i32 : i32, i32, i32
  }
}

</mosaic_0001>

<llo_original>
// kernel: tpu_custom_call.1
$region0: #{tpu_custom_call.1}
  #allocation0 [shape = 'u32[]', space=smem, size = 0x4, offset = 0x4, fixed_abs, tag = 'smem constant byte address 0x4 - core index']
  #allocation1 [shape = 'u32[72,128]{1,0:T(1,128)}', space=vmem, size = 0x9000, scoped, tag = 'internal scratch']
  %s0 = inlined_call_operand.vmem [shape: f32[2,8], index: 0, kind: input, shape index: {}]
  %s1 = inlined_call_operand.hbm [shape: f32[2,8], index: 1, kind: input, shape index: {}]
  %s2 = inlined_call_operand.hbm [shape: f32[2,8], index: 2, kind: input, shape index: {}]
  %s3 = inlined_call_operand.vmem [shape: f32[2,1], index: 3, kind: input, shape index: {}]
  %s4 = inlined_call_operand.vmem [shape: f32[1,2,1], index: 4, kind: output, shape index: {0}]
  %s5 = inlined_call_operand.vmem [shape: f32[1,2,1], index: 5, kind: output, shape index: {1}]
  %6 = xla_tuple %s4, %s5
  %s7 = sld [smem:[#allocation0]]
  $region46: #{tpu_custom_call.1} parent=0
    _
  %s9 = ssub.s32 1, %s7
  %s10 = scalar_select 0, %s9, %s7
  $region1: #{tpu_custom_call.1} parent=0
    #allocation2 [shape = 'u8[1024]{0}', space=vmem, size = 0x400, scoped, tag = 'input window, operand 1, single buffered']
    #allocation3 [shape = 's32[1]{0}', space=sflag, size = 0x4, scoped, tag = 'scoped memory for tpu_custom_call.1']
    #allocation4 [shape = 'u8[1024]{0}', space=vmem, size = 0x400, scoped, tag = 'input window, operand 2, single buffered']
    #allocation5 [shape = 's32[1]{0}', space=sflag, size = 0x4, scoped, tag = 'scoped memory for tpu_custom_call.1']
    %11 = vsyncpa [#allocation3], 0
    %12 = vsyncpa [#allocation5], 0
    // Predicated region
    $region2: #{tpu_custom_call.1} parent=1 // pred_check
      _
    $region3: #{tpu_custom_call.1} parent=1 // pred_check_branch
      %14 = sbr.rel (0) target = $region5
    $region4: #{tpu_custom_call.1} parent=1 // pred_region
      %s15 = sadd.s32 0, 0
      %p16 = scmp.lt.s32.totalorder %s15, 0
      %s17 = scalar_select %p16, %s15, 0
      %p18 = scmp.lt.s32.totalorder %s17, 0
      %s19 = scalar_select %p18, %s17, 0
      %s20 = smul.addr %s19, 2
      %s21 = scalar_lea.vmem %s0, %s20
      %s22 = sadd.s32 0, 0
      %p23 = scmp.lt.s32.totalorder %s22, 0
      %s24 = scalar_select %p23, %s22, 0
    $region5: #{tpu_custom_call.1} parent=1 // pred_fallthru
      _
    // Predicated region
    $region6: #{tpu_custom_call.1} parent=1 // pred_check
      _
    $region7: #{tpu_custom_call.1} parent=1 // pred_check_branch
      %26 = sbr.rel (0) target = $region9
    $region8: #{tpu_custom_call.1} parent=1 // pred_region
      %s27 = sadd.s32 0, 0
      %p28 = scmp.lt.s32.totalorder %s27, 0
      %s29 = scalar_select %p28, %s27, 0
      %31 = vsyncadd [#allocation3], 0
      %s32 = smul.addr %s29, 2
      %s33 = scalar_lea.hbm %s1, %s32
      %s35 = sshll.u32 %s33, 4
      %s36 = int_to_ptr.hbm [resolvable:$true] %s35
      %s37 = sshll.u32 [#allocation2], 4
      %s38 = int_to_ptr.vmem [resolvable:$true] %s37
      %40 = dma.hbm_to_vmem [thread:$0]  %s36, 32, %s38, [#allocation3]
    $region9: #{tpu_custom_call.1} parent=1 // pred_fallthru
      _
    // Predicated region
    $region10: #{tpu_custom_call.1} parent=1 // pred_check
      _
    $region11: #{tpu_custom_call.1} parent=1 // pred_check_branch
      %42 = sbr.rel (0) target = $region13
    $region12: #{tpu_custom_call.1} parent=1 // pred_region
      %s43 = sadd.s32 0, 0
      %p44 = scmp.lt.s32.totalorder %s43, 0
      %s45 = scalar_select %p44, %s43, 0
      %47 = vsyncadd [#allocation5], 0
      %s48 = smul.addr %s45, 2
      %s49 = scalar_lea.hbm %s2, %s48
      %s51 = sshll.u32 %s49, 4
      %s52 = int_to_ptr.hbm [resolvable:$true] %s51
      %s53 = sshll.u32 [#allocation4], 4
      %s54 = int_to_ptr.vmem [resolvable:$true] %s53
      %56 = dma.hbm_to_vmem [thread:$0]  %s52, 32, %s54, [#allocation5]
    $region13: #{tpu_custom_call.1} parent=1 // pred_fallthru
      _
    // Predicated region
    $region14: #{tpu_custom_call.1} parent=1 // pred_check
      _
    $region15: #{tpu_custom_call.1} parent=1 // pred_check_branch
      %58 = sbr.rel (0) target = $region17
    $region16: #{tpu_custom_call.1} parent=1 // pred_region
      _
    $region17: #{tpu_custom_call.1} parent=1 // pred_fallthru
      _
    // Predicated region
    $region18: #{tpu_custom_call.1} parent=1 // pred_check
      _
    $region19: #{tpu_custom_call.1} parent=1 // pred_check_branch
      %60 = sbr.rel (0) target = $region21
    $region20: #{tpu_custom_call.1} parent=1 // pred_region
      %62 = dma.done [#allocation3], 32
    $region21: #{tpu_custom_call.1} parent=1 // pred_fallthru
      _
    // Predicated region
    $region22: #{tpu_custom_call.1} parent=1 // pred_check
      _
    $region23: #{tpu_custom_call.1} parent=1 // pred_check_branch
      %64 = sbr.rel (0) target = $region25
    $region24: #{tpu_custom_call.1} parent=1 // pred_region
      %66 = dma.done [#allocation5], 32
    $region25: #{tpu_custom_call.1} parent=1 // pred_fallthru
      _
    %s67 = sadd.s32 0, 0
    %p68 = scmp.lt.s32.totalorder %s67, 0
    %s69 = scalar_select %p68, %s67, 0
    %p70 = scmp.lt.s32.totalorder %s69, 0
    %s71 = scalar_select %p70, %s69, 0
    %s72 = smul.addr %s71, 2
    %s73 = scalar_lea.vmem %s0, %s72
    %s74 = sadd.s32 0, 0
    %p75 = scmp.lt.s32.totalorder %s74, 0
    %s76 = scalar_select %p75, %s74, 0
    %p77 = scmp.lt.s32.totalorder %s76, 0
    %s78 = scalar_select %p77, %s76, 0
    %s79 = smul.addr %s78, 2
    %s80 = scalar_lea.vmem %s0, %s79
    %s81 = sadd.s32 0, 0
    %p82 = scmp.lt.s32.totalorder %s81, 0
    %s83 = scalar_select %p82, %s81, 0
    %s84 = sadd.s32 0, 0
    %p85 = scmp.lt.s32.totalorder %s84, 0
    %s86 = scalar_select %p85, %s84, 0
    %s87 = sadd.s32 0, 0
    %p88 = scmp.lt.s32.totalorder %s87, 0
    %s89 = scalar_select %p88, %s87, 0
    %p90 = scmp.eq.s32.totalorder 0, 0
    // Predicated region
    $region26: #{tpu_custom_call.1} parent=1 // pred_check
      %p91 = pneg %p90
    $region27: #{tpu_custom_call.1} parent=1 // pred_check_branch
      %93 = sbr.rel (%p91) target = $region29
    $region28: #{tpu_custom_call.1} parent=1 // pred_region
      %vm94 = vcmask 1024
      %95 = vst.msk [vmem:[%s4] sm:$0x3] %vm94, 0.0
      %96 = vst.msk [vmem:[%s5] sm:$0x3] %vm94, 0.0
    $region29: #{tpu_custom_call.1} parent=1 // pred_fallthru
      _
    %s97 = sadd.s32 0, 0
    %s98 = smul.u32 %s97, 8
    %v99 = vlaneseq
    %v100 = vand.u32 %v99, 127
    %v101 = vstv %s98
    %v102 = vadd.s32 %v101, %v100
    %vm103 = vcmp.lt.s32.totalorder %v102, 8
    %v104 = vld [vmem:[%s80] sm:$0x3]
    %v105 = vld [vmem:[#allocation2] sm:$0x3]
    %v106 = vld [vmem:[#allocation4] sm:$0x3]
    %v107 = vsel %vm103, %v106, 0.0
    %v108 = vld [vmem:[%s3] sm:$0x3]
    %v109 = vsub.f32 %v104, %v105
    %v110 = vsel %vm103, %v109, 0.0
    %v111 = vmul.f32 %v110, 1.442695
    %v112 = vpow.pop %v111
    %114 = vset.pattern.permute.xlu0 0
    %115 = vperm.xlu0 %114, %v108
    %v116 = vpop.permute.xlu0 %115
    %v118 = vmul.f32 %v112, %v116
    %v119 = vmax.f32 %v112, 0.8
    %v120 = vmin.f32 %v119, 1.2
    %v121 = vmul.f32 %v120, %v116
    %v122 = vmin.f32 %v118, %v121
    %v123 = vsub.f32 0.0, %v122
    %v124 = vld [vmem:[%s4] sm:$0x3]
    %v125 = vmul.f32 %v123, %v107
    %vm126 = vcmask 58368
    %v127 = vsel %vm126, %v125, 0.0
    %128 = vadd.xlane.f32.xlu0 %v127
    %v129 = vpop.xlane.xlu0 %128
    %v130 = vadd.f32 %v124, %v129
    %vm131 = vcmask 1024
    %132 = vst.msk [vmem:[%s4] sm:$0x3] %vm131, %v130
    %v133 = vld [vmem:[%s5] sm:$0x3]
    %v134 = vsel %vm126, %v107, 0.0
    %135 = vadd.xlane.f32.xlu0 %v134
    %v136 = vpop.xlane.xlu0 %135
    %v137 = vadd.f32 %v133, %v136
    %138 = vst.msk [vmem:[%s5] sm:$0x3] %vm131, %v137
    // Predicated region
    $region30: #{tpu_custom_call.1} parent=1 // pred_check
      _
    $region31: #{tpu_custom_call.1} parent=1 // pred_check_branch
      %140 = sbr.rel (0) target = $region33
    $region32: #{tpu_custom_call.1} parent=1 // pred_region
      _
    $region33: #{tpu_custom_call.1} parent=1 // pred_fallthru
      _
    // Predicated region
    $region34: #{tpu_custom_call.1} parent=1 // pred_check
      _
    $region35: #{tpu_custom_call.1} parent=1 // pred_check_branch
      %142 = sbr.rel (0) target = $region37
    $region36: #{tpu_custom_call.1} parent=1 // pred_region
      _
    $region37: #{tpu_custom_call.1} parent=1 // pred_fallthru
      _
    // Predicated region
    $region38: #{tpu_custom_call.1} parent=1 // pred_check
      _
    $region39: #{tpu_custom_call.1} parent=1 // pred_check_branch
      %144 = sbr.rel (0) target = $region41
    $region40: #{tpu_custom_call.1} parent=1 // pred_region
      _
    $region41: #{tpu_custom_call.1} parent=1 // pred_fallthru
      _
    // Predicated region
    $region42: #{tpu_custom_call.1} parent=1 // pred_check
      _
    $region43: #{tpu_custom_call.1} parent=1 // pred_check_branch
      %146 = sbr.rel (0) target = $region45
    $region44: #{tpu_custom_call.1} parent=1 // pred_region
      _
    $region45: #{tpu_custom_call.1} parent=1 // pred_fallthru
      _
    %147 = vsyncpa [#allocation3], 1
    %148 = vsyncpa [#allocation5], 1

</llo_original>
